<compile_context>
chip_gen: v7x
topology: tpu7x:2x2x1
jax: 0.10.0
libtpu: 0.0.40
codegen_flags: <defaults>
</compile_context>

<pallas_src>
import functools

import jax
import jax.numpy as jnp
from jax.experimental import pallas as pl
from jax.experimental.pallas import tpu as pltpu


def _shortcut_kernel(x_ref, sel_ref, o_ref, *, pad):
    # x_ref:   (NB, C, H*W)        one batch block, lane dim = H*W
    # sel_ref: (H*W, Ho*Wo)        fused 0/1 stride-2 selection matrix (constant)
    # o_ref:   (NB, c_out, Ho*Wo)  c_out = C + 2*pad
    nb, c_in, hw = x_ref.shape
    _, _, howo = o_ref.shape

    # Single contraction per step: (NB*C, HW) @ (HW, HoWo). Exact: 0/1 weights,
    # f32 accumulation, cast back to the output dtype.
    x2d = x_ref[...].reshape(nb * c_in, hw)
    y = jnp.dot(x2d, sel_ref[...], preferred_element_type=jnp.float32)
    y = y.reshape(nb, c_in, howo).astype(o_ref.dtype)

    # Zero only the channel-pad regions (disjoint from the data write).
    if pad > 0:
        zeros = jnp.zeros((nb, pad, howo), dtype=o_ref.dtype)
        o_ref[:, :pad, :] = zeros
        o_ref[:, pad + c_in:, :] = zeros

    # One wide store for all data channels of the whole batch block.
    o_ref[:, pad:pad + c_in, :] = y


def _pick_nb(n, bytes_per_elem, target=2 << 20):
    """Largest divisor of n with ~<=target bytes/step, keeping >=2 grid steps."""
    best = 1
    for d in range(1, n + 1):
        if n % d:
            continue
        if d * bytes_per_elem > target:
            break
        if n >= 2 and n // d < 2:
            break
        best = d
    return best


def identity_shortcut(x_nchw, planes):
    """ResNet option-A shortcut: pad(x[:, :, ::2, ::2], channels +/- planes//4 zeros)."""
    N, C, H, W = x_nchw.shape
    pad = planes // 4
    c_out = C + 2 * pad
    Ho = (H + 1) // 2
    Wo = (W + 1) // 2
    HW, HoWo = H * W, Ho * Wo
    dt = x_nchw.dtype

    # TODO(synk): integer dtypes would need a non-MXU (strided-slice) path; the
    # repo only uses this shortcut on float activations.
    assert jnp.issubdtype(dt, jnp.floating), "identity_shortcut: float inputs only"

    # Fused stride-2 selection matrix: sel[h*W + w, ho*Wo + wo] = (h==2ho)&(w==2wo).
    sel_h = (jnp.arange(H)[:, None] == 2 * jnp.arange(Ho)[None, :]).astype(dt)   # (H, Ho)
    sel_w = (jnp.arange(W)[:, None] == 2 * jnp.arange(Wo)[None, :]).astype(dt)   # (W, Wo)
    sel = (sel_h[:, None, :, None] * sel_w[None, :, None, :]).reshape(HW, HoWo)  # (HW, HoWo)

    # Lane-dense views (contiguous reshapes, free).
    x_flat = x_nchw.reshape(N, C, HW)

    bytes_per_elem = (C * HW + c_out * HoWo) * jnp.dtype(dt).itemsize
    NB = _pick_nb(N, bytes_per_elem)
    grid = (N // NB,)

    kernel = functools.partial(_shortcut_kernel, pad=pad)

    out_flat = pl.pallas_call(
        kernel,
        out_shape=jax.ShapeDtypeStruct((N, c_out, HoWo), dt),
        grid=grid,
        in_specs=[
            pl.BlockSpec((NB, C, HW), lambda n: (n, 0, 0)),
            # constant block: DMA'd once, stays resident in VMEM across steps
            pl.BlockSpec((HW, HoWo), lambda n: (0, 0)),
        ],
        out_specs=pl.BlockSpec((NB, c_out, HoWo), lambda n: (n, 0, 0)),
        compiler_params=pltpu.CompilerParams(dimension_semantics=("parallel",)),
    )(x_flat, sel)

    return out_flat.reshape(N, c_out, Ho, Wo)


if __name__ == "__main__":
    key = jax.random.PRNGKey(0)
    N, C, H, W = 2, 4, 16, 16
    planes = 8  # output planes of the residual block -> pad = planes // 4 = 2
    x = jax.random.normal(key, (N, C, H, W), dtype=jnp.float32)

    shortcut = jax.jit(identity_shortcut, static_argnums=1)
    out = shortcut(x, planes)
    out = jax.block_until_ready(out)

    # pure-JAX reference of the PyTorch transform_function
    pad = planes // 4
    ref = jnp.pad(x[:, :, ::2, ::2], ((0, 0), (pad, pad), (0, 0), (0, 0)))

    assert out.shape == ref.shape, (out.shape, ref.shape)
    assert jnp.allclose(out, ref), "mismatch vs reference"

    print("KERNEL_OK")
</pallas_src>

<mosaic_0001>
module attributes {stable_mosaic.version = 11 : i64} {
  func.func @_shortcut_kernel(%arg0: i32, %arg1: memref<1x4x256xf32, #tpu.memory_space<vmem>>, %arg2: memref<256x64xf32, #tpu.memory_space<vmem>>, %arg3: memref<1x8x64xf32, #tpu.memory_space<vmem>>) attributes {dimension_semantics = [#tpu.dimension_semantics<parallel>], iteration_bounds = array<i64: 2>, scalar_prefetch = 0 : i64, scratch_operands = 0 : i64, tpu.core_type = #tpu.core_type<tc>, window_params = [{transform_indices = @transform_0, window_bounds = array<i64: 1, 4, 256>}, {pipeline_mode = #tpu.pipeline_mode<synchronous>, transform_indices = @transform_1, window_bounds = array<i64: 256, 64>}, {transform_indices = @transform_2, window_bounds = array<i64: 1, 8, 64>}]} {
    %c0 = arith.constant 0 : index
    %c0_0 = arith.constant 0 : index
    %c0_1 = arith.constant 0 : index
    %0 = vector.load %arg1[%c0, %c0_0, %c0_1] : memref<1x4x256xf32, #tpu.memory_space<vmem>>, vector<1x4x256xf32>
    %1 = vector.shape_cast %0 : vector<1x4x256xf32> to vector<4x256xf32>
    %c0_2 = arith.constant 0 : index
    %c0_3 = arith.constant 0 : index
    %2 = vector.load %arg2[%c0_2, %c0_3] : memref<256x64xf32, #tpu.memory_space<vmem>>, vector<256x64xf32>
    %cst = arith.constant dense<0.000000e+00> : vector<4x64xf32>
    %3 = tpu.matmul %1, %2, %cst {dimension_numbers = #tpu.dot_dimension_numbers<[1], [0], [0], [1], [0, 0, 1, 1], [], []>} : vector<4x256xf32>, vector<256x64xf32>, vector<4x64xf32> -> vector<4x64xf32>
    %4 = vector.shape_cast %3 : vector<4x64xf32> to vector<1x4x64xf32>
    %cst_4 = arith.constant 0.000000e+00 : f32
    %5 = vector.broadcast %cst_4 : f32 to vector<1x2x64xf32>
    %c0_5 = arith.constant 0 : index
    %c0_6 = arith.constant 0 : index
    %c0_7 = arith.constant 0 : index
    %6 = vector.load %arg3[%c0_5, %c0_6, %c0_7] : memref<1x8x64xf32, #tpu.memory_space<vmem>>, vector<1x2x64xf32>
    tpu.vector_store %arg3[%c0_5, %c0_6, %c0_7], %5 {strides = array<i32>} : memref<1x8x64xf32, #tpu.memory_space<vmem>>, vector<1x2x64xf32>,
    %c0_8 = arith.constant 0 : index
    %c6 = arith.constant 6 : index
    %c0_9 = arith.constant 0 : index
    %7 = vector.load %arg3[%c0_8, %c6, %c0_9] : memref<1x8x64xf32, #tpu.memory_space<vmem>>, vector<1x2x64xf32>
    tpu.vector_store %arg3[%c0_8, %c6, %c0_9], %5 {strides = array<i32>} : memref<1x8x64xf32, #tpu.memory_space<vmem>>, vector<1x2x64xf32>,
    %c0_10 = arith.constant 0 : index
    %c2 = arith.constant 2 : index
    %c0_11 = arith.constant 0 : index
    %8 = vector.load %arg3[%c0_10, %c2, %c0_11] : memref<1x8x64xf32, #tpu.memory_space<vmem>>, vector<1x4x64xf32>
    tpu.vector_store %arg3[%c0_10, %c2, %c0_11], %4 {strides = array<i32>} : memref<1x8x64xf32, #tpu.memory_space<vmem>>, vector<1x4x64xf32>,
    return
  }
  func.func @transform_0(%arg0: i32) -> (i32, i32, i32) {
    %c0_i32 = arith.constant 0 : i32
    %c0_i32_0 = arith.constant 0 : i32
    %c0_i32_1 = arith.constant 0 : i32
    return %arg0, %c0_i32, %c0_i32_0 : i32, i32, i32
  }
  func.func @transform_1(%arg0: i32) -> (i32, i32) {
    %c0_i32 = arith.constant 0 : i32
    %c0_i32_0 = arith.constant 0 : i32
    %c0_i32_1 = arith.constant 0 : i32
    return %c0_i32, %c0_i32_0 : i32, i32
  }
  func.func @transform_2(%arg0: i32) -> (i32, i32, i32) {
    %c0_i32 = arith.constant 0 : i32
    %c0_i32_0 = arith.constant 0 : i32
    %c0_i32_1 = arith.constant 0 : i32
    return %arg0, %c0_i32, %c0_i32_0 : i32, i32, i32
  }
}

</mosaic_0001>

<llo_original>
// kernel: identity_shortcut.1
$region0: #{identity_shortcut.1}
  #allocation0 [shape = 'u32[]', space=smem, size = 0x4, offset = 0x4, fixed_abs, tag = 'smem constant byte address 0x4 - core index']
  #allocation1 [shape = 'u32[144,128]{1,0:T(1,128)}', space=vmem, size = 0x12000, scoped, tag = 'internal scratch']
  %s0 = inlined_call_operand.vmem [shape: f32[2,4,256], index: 0, kind: input, shape index: {}]
  %s1 = inlined_call_operand.vmem [shape: f32[256,64], index: 1, kind: input, shape index: {}]
  %s2 = inlined_call_operand.vmem [shape: f32[2,8,64], index: 2, kind: output, shape index: {}]
  %s3 = sld [smem:[#allocation0]]
  $region41: #{identity_shortcut.1} parent=0
    _
  %s5 = ssub.s32 1, %s3
  %s6 = scalar_select 0, %s5, %s3
  loop: start=0, step=1, limit=4
  $region2: #{identity_shortcut.1} parent=0 // loop_pre_header
    _
  $region3: #{identity_shortcut.1} parent=0 // loop_header
    %s8 = sphi 0, %s12
    %p9 = scmp.ge.s32.totalorder %s8, 4
    %s18 = sphi 0, %s20
    %s21 = sphi 0, %s18
    %s22 = sphi 0, %s21
    %s38 = sphi 0, %s22
    %s42 = sphi 0, %s42
    %s44 = sphi 0, %s42
    %s45 = sphi 0, %s44
    %s59 = sphi 0, %s45
    %s65 = sphi 0, %s67
    %s68 = sphi 0, %s65
    %s69 = sphi 0, %s68
    %s85 = sphi 0, %s69
  $region4: #{identity_shortcut.1} parent=0 // loop_header_branch
    %11 = sbr.rel (%p9) target = $region8
  $region5: #{identity_shortcut.1} parent=0 // loop_body
    %s13 = ssub.s32 %s8, 1
    %s14 = ssub.s32 %s8, 2
    %s15 = sadd.s32 %s8, 1
    %s16 = ssub.s32 %s8, %s15
    %p17 = scmp.eq.s32.totalorder %s16, 0
    %s19 = sadd.s32 %s18, 1
    %s20 = scalar_select %p17, %s18, %s19
    %p23 = pneg %p17
    %p24 = scmp.eq.s32.totalorder %s8, 1
    %p25 = por %p23, %p24
    %p26 = scmp.ne.s32.totalorder %s18, %s21
    %p27 = scmp.eq.s32.totalorder %s8, 0
    %p28 = por %p26, %p27
    %p29 = scmp.ne.s32.totalorder %s18, %s21
    %p30 = scmp.eq.s32.totalorder %s13, 1
    %p31 = por %p29, %p30
    %p32 = scmp.ne.s32.totalorder %s21, %s22
    %p33 = scmp.eq.s32.totalorder %s13, 0
    %p34 = por %p32, %p33
    %p35 = scmp.ne.s32.totalorder %s21, %s22
    %p36 = scmp.eq.s32.totalorder %s14, 1
    %p37 = por %p35, %p36
    %p39 = scmp.ne.s32.totalorder %s22, %s38
    %p40 = scmp.eq.s32.totalorder %s14, 0
    %p41 = por %p39, %p40
    %s43 = sadd.s32 %s42, 1
    %p46 = scmp.eq.s32.totalorder %s8, 1
    %p47 = scmp.ne.s32.totalorder %s42, %s44
    %p48 = scmp.eq.s32.totalorder %s8, 0
    %p49 = por %p47, %p48
    %p50 = scmp.ne.s32.totalorder %s42, %s44
    %p51 = scmp.eq.s32.totalorder %s13, 1
    %p52 = por %p50, %p51
    %p53 = scmp.ne.s32.totalorder %s44, %s45
    %p54 = scmp.eq.s32.totalorder %s13, 0
    %p55 = por %p53, %p54
    %p56 = scmp.ne.s32.totalorder %s44, %s45
    %p57 = scmp.eq.s32.totalorder %s14, 1
    %p58 = por %p56, %p57
    %p60 = scmp.ne.s32.totalorder %s45, %s59
    %p61 = scmp.eq.s32.totalorder %s14, 0
    %p62 = por %p60, %p61
    %s63 = ssub.s32 %s8, %s15
    %p64 = scmp.eq.s32.totalorder %s63, 0
    %s66 = sadd.s32 %s65, 1
    %s67 = scalar_select %p64, %s65, %s66
    %p70 = pneg %p64
    %p71 = scmp.eq.s32.totalorder %s8, 1
    %p72 = por %p70, %p71
    %p73 = scmp.ne.s32.totalorder %s65, %s68
    %p74 = scmp.eq.s32.totalorder %s8, 0
    %p75 = por %p73, %p74
    %p76 = scmp.ne.s32.totalorder %s65, %s68
    %p77 = scmp.eq.s32.totalorder %s13, 1
    %p78 = por %p76, %p77
    %p79 = scmp.ne.s32.totalorder %s68, %s69
    %p80 = scmp.eq.s32.totalorder %s13, 0
    %p81 = por %p79, %p80
    %p82 = scmp.ne.s32.totalorder %s68, %s69
    %p83 = scmp.eq.s32.totalorder %s14, 1
    %p84 = por %p82, %p83
    %p86 = scmp.ne.s32.totalorder %s69, %s85
    %p87 = scmp.eq.s32.totalorder %s14, 0
    %p88 = por %p86, %p87
    %p89 = scmp.le.s32.totalorder 1, %s8
    %p90 = scmp.lt.s32.totalorder %s8, 3
    %p91 = pnand %p89, %p90
    %p92 = pneg %p91
    // Predicated region
    $region9: #{identity_shortcut.1} parent=5 // pred_check
      _
    $region10: #{identity_shortcut.1} parent=5 // pred_check_branch
      %94 = sbr.rel (%p91) target = $region12
    $region11: #{identity_shortcut.1} parent=5 // pred_region
      %s95 = ssub.s32 %s8, 1
      // Predicated region
      $region13: #{identity_shortcut.1} parent=11 // pred_check
        %p96 = pneg %p55
      $region14: #{identity_shortcut.1} parent=11 // pred_check_branch
        %98 = sbr.rel (%p96) target = $region16
      $region15: #{identity_shortcut.1} parent=11 // pred_region
        _
      $region16: #{identity_shortcut.1} parent=11 // pred_fallthru
        _
    $region12: #{identity_shortcut.1} parent=5 // pred_fallthru
      _
    %p99 = scmp.lt.s32.totalorder %s8, 2
    // Predicated region
    $region17: #{identity_shortcut.1} parent=5 // pred_check
      %p100 = pneg %p99
    $region18: #{identity_shortcut.1} parent=5 // pred_check_branch
      %102 = sbr.rel (%p100) target = $region20
    $region19: #{identity_shortcut.1} parent=5 // pred_region
      // Predicated region
      $region21: #{identity_shortcut.1} parent=19 // pred_check
        %p103 = pneg %p28
      $region22: #{identity_shortcut.1} parent=19 // pred_check_branch
        %105 = sbr.rel (%p103) target = $region24
      $region23: #{identity_shortcut.1} parent=19 // pred_region
        %p106 = scmp.lt.s32.totalorder %s8, 1
        %s107 = scalar_select %p106, %s8, 1
        %s108 = smul.addr %s107, 2
        %s109 = smul.addr %s108, 4
        %s110 = scalar_lea.vmem %s0, %s109
      $region24: #{identity_shortcut.1} parent=19 // pred_fallthru
        _
    $region20: #{identity_shortcut.1} parent=5 // pred_fallthru
      _
    %p111 = scmp.le.s32.totalorder 1, %s8
    %p112 = scmp.lt.s32.totalorder %s8, 3
    %p113 = pnand %p111, %p112
    %p114 = pneg %p113
    // Predicated region
    $region25: #{identity_shortcut.1} parent=5 // pred_check
      _
    $region26: #{identity_shortcut.1} parent=5 // pred_check_branch
      %116 = sbr.rel (%p113) target = $region28
    $region27: #{identity_shortcut.1} parent=5 // pred_region
      %s117 = ssub.s32 %s8, 1
      %p118 = scmp.lt.s32.totalorder %s13, 1
      %s119 = scalar_select %p118, %s13, 1
      %s120 = smul.addr %s119, 2
      %s121 = smul.addr %s120, 4
      %s122 = scalar_lea.vmem %s0, %s121
      %p123 = pneg %p34
      %p124 = pneg %p31
      %p125 = pneg %p55
      %p126 = pneg %p52
      %p127 = pneg %p81
      %p128 = pneg %p78
      %p129 = scmp.lt.s32.totalorder %s13, 1
      %s130 = scalar_select %p129, %s13, 1
      %s131 = smul.addr %s130, 8
      %s132 = scalar_lea.vmem %s2, %s131
      %p133 = scmp.lt.s32.totalorder %s13, 1
      %s134 = scalar_select %p133, %s13, 1
      %s135 = smul.addr %s134, 2
      %s136 = smul.addr %s135, 4
      %s137 = scalar_lea.vmem %s0, %s136
      %p138 = scmp.lt.s32.totalorder %s13, 1
      %s139 = scalar_select %p138, %s13, 1
      %s140 = smul.addr %s139, 8
      %s141 = scalar_lea.vmem %s2, %s140
      %v142 = vld [vmem:[%s137] sm:$0xff]
      %v143 = vld [vmem:[%s1] sm:$0xff]
      %v144 = vld [vmem:[%s1 + $0x8] sm:$0xff]
      %v145 = vld [vmem:[%s1 + $0x10] sm:$0xff]
      %v146 = vld [vmem:[%s1 + $0x18] sm:$0xff]
      %v147 = vld [vmem:[%s1 + $0x20] sm:$0xff]
      %v148 = vld [vmem:[%s1 + $0x28] sm:$0xff]
      %v149 = vld [vmem:[%s1 + $0x30] sm:$0xff]
      %v150 = vld [vmem:[%s1 + $0x38] sm:$0xff]
      %v151 = vld [vmem:[%s1 + $0x40] sm:$0xff]
      %v152 = vld [vmem:[%s1 + $0x48] sm:$0xff]
      %v153 = vld [vmem:[%s1 + $0x50] sm:$0xff]
      %v154 = vld [vmem:[%s1 + $0x58] sm:$0xff]
      %v155 = vld [vmem:[%s1 + $0x60] sm:$0xff]
      %v156 = vld [vmem:[%s1 + $0x68] sm:$0xff]
      %v157 = vld [vmem:[%s1 + $0x70] sm:$0xff]
      %v158 = vld [vmem:[%s1 + $0x78] sm:$0xff]
      %v159 = vld [vmem:[%s1 + $0x80] sm:$0xff]
      %v160 = vld [vmem:[%s1 + $0x88] sm:$0xff]
      %v161 = vld [vmem:[%s1 + $0x90] sm:$0xff]
      %v162 = vld [vmem:[%s1 + $0x98] sm:$0xff]
      %v163 = vld [vmem:[%s1 + $0xa0] sm:$0xff]
      %v164 = vld [vmem:[%s1 + $0xa8] sm:$0xff]
      %v165 = vld [vmem:[%s1 + $0xb0] sm:$0xff]
      %v166 = vld [vmem:[%s1 + $0xb8] sm:$0xff]
      %v167 = vld [vmem:[%s1 + $0xc0] sm:$0xff]
      %v168 = vld [vmem:[%s1 + $0xc8] sm:$0xff]
      %v169 = vld [vmem:[%s1 + $0xd0] sm:$0xff]
      %v170 = vld [vmem:[%s1 + $0xd8] sm:$0xff]
      %v171 = vld [vmem:[%s1 + $0xe0] sm:$0xff]
      %v172 = vld [vmem:[%s1 + $0xe8] sm:$0xff]
      %v173 = vld [vmem:[%s1 + $0xf0] sm:$0xff]
      %v174 = vld [vmem:[%s1 + $0xf8] sm:$0xff]
      %v176 = vcombine.high %v142, %v142
      %178 = vmatprep.subr.mxu0 0.0
      %179 = vmatpush1.msra.mxu0 %v143
      %180 = vmatprep.subr.mxu0 0.0
      %181 = vmatpush1.msra.mxu0 %v144
      %182 = vmatprep.subr.mxu0 0.0
      %183 = vmatpush1.msra.mxu0 %v145
      %184 = vmatprep.subr.mxu0 0.0
      %185 = vmatpush1.msra.mxu0 %v146
      %186 = vmatprep.subr.mxu0 0.0
      %187 = vmatpush1.msra.mxu0 %v147
      %188 = vmatprep.subr.mxu0 0.0
      %189 = vmatpush1.msra.mxu0 %v148
      %190 = vmatprep.subr.mxu0 0.0
      %191 = vmatpush1.msra.mxu0 %v149
      %192 = vmatprep.subr.mxu0 0.0
      %193 = vmatpush1.msra.mxu0 %v150
      %194 = vmatprep.subr.mxu0 0.0
      %195 = vmatpush1.msra.mxu0 %v151
      %196 = vmatprep.subr.mxu0 0.0
      %197 = vmatpush1.msra.mxu0 %v152
      %198 = vmatprep.subr.mxu0 0.0
      %199 = vmatpush1.msra.mxu0 %v153
      %200 = vmatprep.subr.mxu0 0.0
      %201 = vmatpush1.msra.mxu0 %v154
      %202 = vmatprep.subr.mxu0 0.0
      %203 = vmatpush1.msra.mxu0 %v155
      %204 = vmatprep.subr.mxu0 0.0
      %205 = vmatpush1.msra.mxu0 %v156
      %206 = vmatprep.subr.mxu0 0.0
      %207 = vmatpush1.msra.mxu0 %v157
      %208 = vmatprep.subr.mxu0 0.0
      %209 = vmatpush1.msra.mxu0 %v158
      %210 = vmatprep.subr.mxu0 0.0
      %211 = vmatpush1.msra.mxu0 %v159
      %212 = vmatprep.subr.mxu0 0.0
      %213 = vmatpush1.msra.mxu0 %v160
      %214 = vmatprep.subr.mxu0 0.0
      %215 = vmatpush1.msra.mxu0 %v161
      %216 = vmatprep.subr.mxu0 0.0
      %217 = vmatpush1.msra.mxu0 %v162
      %218 = vmatprep.subr.mxu0 0.0
      %219 = vmatpush1.msra.mxu0 %v163
      %220 = vmatprep.subr.mxu0 0.0
      %221 = vmatpush1.msra.mxu0 %v164
      %222 = vmatprep.subr.mxu0 0.0
      %223 = vmatpush1.msra.mxu0 %v165
      %224 = vmatprep.subr.mxu0 0.0
      %225 = vmatpush1.msra.mxu0 %v166
      %226 = vmatprep.subr.mxu0 0.0
      %227 = vmatpush1.msra.mxu0 %v167
      %228 = vmatprep.subr.mxu0 0.0
      %229 = vmatpush1.msra.mxu0 %v168
      %230 = vmatprep.subr.mxu0 0.0
      %231 = vmatpush1.msra.mxu0 %v169
      %232 = vmatprep.subr.mxu0 0.0
      %233 = vmatpush1.msra.mxu0 %v170
      %234 = vmatprep.subr.mxu0 0.0
      %235 = vmatpush1.msra.mxu0 %v171
      %236 = vmatprep.subr.mxu0 0.0
      %237 = vmatpush1.msra.mxu0 %v172
      %238 = vmatprep.subr.mxu0 0.0
      %239 = vmatpush1.msra.mxu0 %v173
      %240 = vmatprep.subr.mxu0 0.0
      %241 = vmatpush1.msra.mxu0 %v174
      %242 = vmatprep.mubr.f32.mxu0 %v176
      %243 = vmatmul.mubr.f32.gmra.mrb[0].mxu0 %v142
      %v244 = vpop.f32.mrb[0].mxu0
      %v245 = vadd.f32 0.0, %v244
      %v246 = vpop.f32.mrb[0].mxu0
      %247 = vdwg.mxu0
      %vm248 = vcmask 517120
      %249 = vst.msk [vmem:[%s141] sm:$0x3] %vm248, 0.0
      %250 = vst.msk [vmem:[%s141 + $0x6] sm:$0x3] %vm248, 0.0
      %vm251 = vcmask 519168
      %252 = vst.msk [vmem:[%s141 + $0x2] sm:$0xf] %vm251, %v245
      %p253 = scmp.lt.s32.totalorder %s13, 1
      %s254 = scalar_select %p253, %s13, 1
      %s255 = smul.addr %s254, 8
      %s256 = scalar_lea.vmem %s2, %s255
      // Predicated region
      $region29: #{identity_shortcut.1} parent=27 // pred_check
        %p257 = pneg %p78
      $region30: #{identity_shortcut.1} parent=27 // pred_check_branch
        %259 = sbr.rel (%p257) target = $region32
      $region31: #{identity_shortcut.1} parent=27 // pred_region
        _
      $region32: #{identity_shortcut.1} parent=27 // pred_fallthru
        _
    $region28: #{identity_shortcut.1} parent=5 // pred_fallthru
      _
    %p260 = scmp.le.s32.totalorder 2, %s8
    // Predicated region
    $region33: #{identity_shortcut.1} parent=5 // pred_check
      %p261 = pneg %p260
    $region34: #{identity_shortcut.1} parent=5 // pred_check_branch
      %263 = sbr.rel (%p261) target = $region36
    $region35: #{identity_shortcut.1} parent=5 // pred_region
      %s264 = ssub.s32 %s8, 2
      // Predicated region
      $region37: #{identity_shortcut.1} parent=35 // pred_check
        %p265 = pneg %p84
      $region38: #{identity_shortcut.1} parent=35 // pred_check_branch
        %267 = sbr.rel (%p265) target = $region40
      $region39: #{identity_shortcut.1} parent=35 // pred_region
        %p268 = scmp.lt.s32.totalorder %s14, 1
        %s269 = scalar_select %p268, %s14, 1
        %s270 = smul.addr %s269, 8
        %s271 = scalar_lea.vmem %s2, %s270
      $region40: #{identity_shortcut.1} parent=35 // pred_fallthru
        _
    $region36: #{identity_shortcut.1} parent=5 // pred_fallthru
      _
  $region6: #{identity_shortcut.1} parent=0 // loop_footer
    %s12 = sadd.s32 1, %s8
  $region7: #{identity_shortcut.1} parent=0 // loop_footer_branch
    %7 = sbr.rel target = $region3
  $region8: #{identity_shortcut.1} parent=0 // loop_exit
    _

</llo_original>
